<compile_context>
chip_gen: v6e
topology: v6e:2x2x1
jax: 0.10.0
libtpu: 0.0.40
codegen_flags: <defaults>
</compile_context>

<pallas_src>
import jax
import jax.numpy as jnp
from jax.experimental import pallas as pl
from jax.experimental.pallas import tpu as pltpu


_LANE = 128
_SUBLANE = 8
# 2 inputs + 3 partial-sum outputs, each (conservatively) double-buffered ->
# ~10 block-sized f32 buffers resident in VMEM at once.
_VMEM_BUDGET_BYTES = 8 * 1024 * 1024
_BUFFERS_PER_BLOCK = 10


def _dice_sums_kernel(p_ref, t_ref, inter_ref, psum_ref, tsum_ref):
    """Accumulate elementwise partial sums across the (arbitrary) column axis."""
    j = pl.program_id(1)

    @pl.when(j == 0)
    def _init():
        inter_ref[...] = jnp.zeros_like(inter_ref)
        psum_ref[...] = jnp.zeros_like(psum_ref)
        tsum_ref[...] = jnp.zeros_like(tsum_ref)

    p = p_ref[...].astype(jnp.float32)
    t = t_ref[...].astype(jnp.float32)
    # Pure VPU adds; the output blocks stay resident in VMEM across the whole
    # j loop (constant index along the reduction axis) and are written back to
    # HBM only once at the end of the grid for each parallel (core) index.
    inter_ref[0] += p * t
    psum_ref[0] += p
    tsum_ref[0] += t


def _dice_partial_sums(pred_2d, true_2d, cols_valid, block_cols):
    """Returns (sum(p*t), sum(p), sum(t)) over the first `cols_valid` columns."""
    rows, _ = pred_2d.shape
    num_blocks = cols_valid // block_cols
    # Shard the reduction across 2 TensorCores (v7x) when it splits evenly;
    # a size-2 "parallel" axis is a harmless serial loop on 1-TC chips.
    num_par = 2 if (num_blocks >= 2 and num_blocks % 2 == 0) else 1
    inner = num_blocks // num_par

    part = jax.ShapeDtypeStruct((num_par, rows, block_cols), jnp.float32)
    in_spec = pl.BlockSpec((rows, block_cols), lambda c, j: (0, c * inner + j))
    out_spec = pl.BlockSpec((1, rows, block_cols), lambda c, j: (c, 0, 0))

    inter, psum, tsum = pl.pallas_call(
        _dice_sums_kernel,
        out_shape=(part, part, part),
        grid_spec=pltpu.PrefetchScalarGridSpec(
            num_scalar_prefetch=0,
            grid=(num_par, inner),
            in_specs=[in_spec, in_spec],
            out_specs=(out_spec, out_spec, out_spec),
        ),
        compiler_params=pltpu.CompilerParams(
            dimension_semantics=("parallel", "arbitrary"),
        ),
    )(pred_2d, true_2d)
    # Tiny epilogue reduction of the per-core, block-shaped partials.
    return jnp.sum(inter), jnp.sum(psum), jnp.sum(tsum)


def _max_lane_tiles_per_block(rows):
    rows_pad = ((rows + _SUBLANE - 1) // _SUBLANE) * _SUBLANE
    max_elems = _VMEM_BUDGET_BYTES // (_BUFFERS_PER_BLOCK * 4)
    return max(1, (max_elems // rows_pad) // _LANE)


def dice_loss(y_pred, y_true, smooth=1.0):
    """Mirror of PyTorch DiceLoss.forward. Inputs: NCHW, same shape/dtype."""
    assert y_pred.shape == y_true.shape
    n = y_pred.shape[0]
    hw = 1
    for s in y_pred.shape[2:]:
        hw *= s

    rows_pad = ((n + _SUBLANE - 1) // _SUBLANE) * _SUBLANE
    direct_ok = (
        hw % _LANE == 0
        and rows_pad * _LANE * _BUFFERS_PER_BLOCK * 4 <= _VMEM_BUDGET_BYTES
    )

    if direct_ok:
        # No-copy path: view NCHW as (N, C*H*W).  Channel 0 of batch row i is
        # exactly the first H*W (contiguous) columns of row i, which the
        # BlockSpec DMAs straight out of HBM.
        p2 = y_pred.reshape(n, -1)
        t2 = y_true.reshape(n, -1)
        cols_valid = hw
        max_tiles = _max_lane_tiles_per_block(n)
        q = hw // _LANE
        d = 1
        for cand in range(min(q, max_tiles), 0, -1):
            if q % cand == 0:
                d = cand
                break
        block_cols = d * _LANE
    else:
        # Fallback for awkward shapes: materialize the flattened channel-0
        # slice and zero-pad (zero padding does not change any of the sums).
        p2 = y_pred[:, 0].reshape(1, -1)
        t2 = y_true[:, 0].reshape(1, -1)
        total = p2.shape[1]
        max_tiles = _max_lane_tiles_per_block(1)
        needed_tiles = (total + _LANE - 1) // _LANE
        block_cols = _LANE * min(max_tiles, needed_tiles)
        cols_valid = ((total + block_cols - 1) // block_cols) * block_cols
        pad = cols_valid - total
        p2 = jnp.pad(p2, ((0, 0), (0, pad)))
        t2 = jnp.pad(t2, ((0, 0), (0, pad)))

    inter, psum, tsum = _dice_partial_sums(p2, t2, cols_valid, block_cols)

    dsc = (2.0 * inter + smooth) / (psum + tsum + smooth)
    return (1.0 - dsc).astype(y_pred.dtype)


if __name__ == "__main__":
    key = jax.random.PRNGKey(0)
    k1, k2 = jax.random.split(key)

    # Small shapes consistent with a segmentation output: N=2, C=4, H=W=16.
    y_pred = jax.nn.sigmoid(jax.random.normal(k1, (2, 4, 16, 16), jnp.float32))
    y_true = (jax.random.uniform(k2, (2, 4, 16, 16), jnp.float32) > 0.5).astype(
        jnp.float32
    )

    loss = jax.block_until_ready(jax.jit(dice_loss)(y_pred, y_true))

    # Reference check in plain JAX (same math as the PyTorch module).
    p = y_pred[:, 0].reshape(-1)
    t = y_true[:, 0].reshape(-1)
    inter = jnp.sum(p * t)
    ref = 1.0 - (2.0 * inter + 1.0) / (jnp.sum(p) + jnp.sum(t) + 1.0)
    assert jnp.allclose(loss, ref, rtol=1e-5, atol=1e-6), (loss, ref)

    print("KERNEL_OK")
</pallas_src>

<mosaic_0001>
module attributes {stable_mosaic.version = 11 : i64} {
  func.func @_dice_sums_kernel(%arg0: i32, %arg1: i32, %arg2: memref<2x256xf32, #tpu.memory_space<vmem>>, %arg3: memref<2x256xf32, #tpu.memory_space<vmem>>, %arg4: memref<1x2x256xf32, #tpu.memory_space<vmem>>, %arg5: memref<1x2x256xf32, #tpu.memory_space<vmem>>, %arg6: memref<1x2x256xf32, #tpu.memory_space<vmem>>) attributes {dimension_semantics = [#tpu.dimension_semantics<parallel>, #tpu.dimension_semantics<arbitrary>], iteration_bounds = array<i64: 1, 1>, scalar_prefetch = 0 : i64, scratch_operands = 0 : i64, tpu.core_type = #tpu.core_type<tc>, window_params = [{transform_indices = @transform_0, window_bounds = array<i64: 2, 256>}, {transform_indices = @transform_1, window_bounds = array<i64: 2, 256>}, {transform_indices = @transform_2, window_bounds = array<i64: 1, 2, 256>}, {transform_indices = @transform_3, window_bounds = array<i64: 1, 2, 256>}, {transform_indices = @transform_4, window_bounds = array<i64: 1, 2, 256>}]} {
    %c0_i32 = arith.constant 0 : i32
    %0 = arith.cmpi eq, %arg1, %c0_i32 : i32
    %1 = arith.extui %0 : i1 to i32
    %c0_i32_0 = arith.constant 0 : i32
    %2 = arith.cmpi ne, %1, %c0_i32_0 : i32
    scf.if %2 {
      %cst = arith.constant 0.000000e+00 : f32
      %24 = vector.broadcast %cst : f32 to vector<1x2x256xf32>
      %c0_22 = arith.constant 0 : index
      %c0_23 = arith.constant 0 : index
      %c0_24 = arith.constant 0 : index
      %25 = vector.load %arg4[%c0_22, %c0_23, %c0_24] : memref<1x2x256xf32, #tpu.memory_space<vmem>>, vector<1x2x256xf32>
      tpu.vector_store %arg4[%c0_22, %c0_23, %c0_24], %24 {strides = array<i32>} : memref<1x2x256xf32, #tpu.memory_space<vmem>>, vector<1x2x256xf32>,
      %cst_25 = arith.constant 0.000000e+00 : f32
      %26 = vector.broadcast %cst_25 : f32 to vector<1x2x256xf32>
      %c0_26 = arith.constant 0 : index
      %c0_27 = arith.constant 0 : index
      %c0_28 = arith.constant 0 : index
      %27 = vector.load %arg5[%c0_26, %c0_27, %c0_28] : memref<1x2x256xf32, #tpu.memory_space<vmem>>, vector<1x2x256xf32>
      tpu.vector_store %arg5[%c0_26, %c0_27, %c0_28], %26 {strides = array<i32>} : memref<1x2x256xf32, #tpu.memory_space<vmem>>, vector<1x2x256xf32>,
      %cst_29 = arith.constant 0.000000e+00 : f32
      %28 = vector.broadcast %cst_29 : f32 to vector<1x2x256xf32>
      %c0_30 = arith.constant 0 : index
      %c0_31 = arith.constant 0 : index
      %c0_32 = arith.constant 0 : index
      %29 = vector.load %arg6[%c0_30, %c0_31, %c0_32] : memref<1x2x256xf32, #tpu.memory_space<vmem>>, vector<1x2x256xf32>
      tpu.vector_store %arg6[%c0_30, %c0_31, %c0_32], %28 {strides = array<i32>} : memref<1x2x256xf32, #tpu.memory_space<vmem>>, vector<1x2x256xf32>,
    } else {
    }
    %c0 = arith.constant 0 : index
    %c0_1 = arith.constant 0 : index
    %3 = vector.load %arg2[%c0, %c0_1] : memref<2x256xf32, #tpu.memory_space<vmem>>, vector<2x256xf32>
    %c0_2 = arith.constant 0 : index
    %c0_3 = arith.constant 0 : index
    %4 = vector.load %arg3[%c0_2, %c0_3] : memref<2x256xf32, #tpu.memory_space<vmem>>, vector<2x256xf32>
    %c0_4 = arith.constant 0 : index
    %c0_5 = arith.constant 0 : index
    %c0_6 = arith.constant 0 : index
    %5 = vector.load %arg4[%c0_4, %c0_5, %c0_6] : memref<1x2x256xf32, #tpu.memory_space<vmem>>, vector<1x2x256xf32>
    %6 = vector.shape_cast %5 : vector<1x2x256xf32> to vector<2x256xf32>
    %7 = arith.mulf %3, %4 : vector<2x256xf32>
    %8 = arith.addf %6, %7 : vector<2x256xf32>
    %c0_7 = arith.constant 0 : index
    %c0_8 = arith.constant 0 : index
    %c0_9 = arith.constant 0 : index
    %9 = vector.load %arg4[%c0_7, %c0_8, %c0_9] : memref<1x2x256xf32, #tpu.memory_space<vmem>>, vector<1x2x256xf32>
    %10 = vector.shape_cast %9 : vector<1x2x256xf32> to vector<2x256xf32>
    %11 = vector.shape_cast %8 : vector<2x256xf32> to vector<1x2x256xf32>
    tpu.vector_store %arg4[%c0_7, %c0_8, %c0_9], %11 {strides = array<i32>} : memref<1x2x256xf32, #tpu.memory_space<vmem>>, vector<1x2x256xf32>,
    %c0_10 = arith.constant 0 : index
    %c0_11 = arith.constant 0 : index
    %c0_12 = arith.constant 0 : index
    %12 = vector.load %arg5[%c0_10, %c0_11, %c0_12] : memref<1x2x256xf32, #tpu.memory_space<vmem>>, vector<1x2x256xf32>
    %13 = vector.shape_cast %12 : vector<1x2x256xf32> to vector<2x256xf32>
    %14 = arith.addf %13, %3 : vector<2x256xf32>
    %c0_13 = arith.constant 0 : index
    %c0_14 = arith.constant 0 : index
    %c0_15 = arith.constant 0 : index
    %15 = vector.load %arg5[%c0_13, %c0_14, %c0_15] : memref<1x2x256xf32, #tpu.memory_space<vmem>>, vector<1x2x256xf32>
    %16 = vector.shape_cast %15 : vector<1x2x256xf32> to vector<2x256xf32>
    %17 = vector.shape_cast %14 : vector<2x256xf32> to vector<1x2x256xf32>
    tpu.vector_store %arg5[%c0_13, %c0_14, %c0_15], %17 {strides = array<i32>} : memref<1x2x256xf32, #tpu.memory_space<vmem>>, vector<1x2x256xf32>,
    %c0_16 = arith.constant 0 : index
    %c0_17 = arith.constant 0 : index
    %c0_18 = arith.constant 0 : index
    %18 = vector.load %arg6[%c0_16, %c0_17, %c0_18] : memref<1x2x256xf32, #tpu.memory_space<vmem>>, vector<1x2x256xf32>
    %19 = vector.shape_cast %18 : vector<1x2x256xf32> to vector<2x256xf32>
    %20 = arith.addf %19, %4 : vector<2x256xf32>
    %c0_19 = arith.constant 0 : index
    %c0_20 = arith.constant 0 : index
    %c0_21 = arith.constant 0 : index
    %21 = vector.load %arg6[%c0_19, %c0_20, %c0_21] : memref<1x2x256xf32, #tpu.memory_space<vmem>>, vector<1x2x256xf32>
    %22 = vector.shape_cast %21 : vector<1x2x256xf32> to vector<2x256xf32>
    %23 = vector.shape_cast %20 : vector<2x256xf32> to vector<1x2x256xf32>
    tpu.vector_store %arg6[%c0_19, %c0_20, %c0_21], %23 {strides = array<i32>} : memref<1x2x256xf32, #tpu.memory_space<vmem>>, vector<1x2x256xf32>,
    return
  }
  func.func @transform_0(%arg0: i32, %arg1: i32) -> (i32, i32) {
    %c1_i32 = arith.constant 1 : i32
    %0 = arith.muli %arg0, %c1_i32 : i32
    %1 = arith.addi %0, %arg1 : i32
    %c0_i32 = arith.constant 0 : i32
    %c0_i32_0 = arith.constant 0 : i32
    return %c0_i32, %1 : i32, i32
  }
  func.func @transform_1(%arg0: i32, %arg1: i32) -> (i32, i32) {
    %c1_i32 = arith.constant 1 : i32
    %0 = arith.muli %arg0, %c1_i32 : i32
    %1 = arith.addi %0, %arg1 : i32
    %c0_i32 = arith.constant 0 : i32
    %c0_i32_0 = arith.constant 0 : i32
    return %c0_i32, %1 : i32, i32
  }
  func.func @transform_2(%arg0: i32, %arg1: i32) -> (i32, i32, i32) {
    %c0_i32 = arith.constant 0 : i32
    %c0_i32_0 = arith.constant 0 : i32
    %c0_i32_1 = arith.constant 0 : i32
    return %arg0, %c0_i32, %c0_i32_0 : i32, i32, i32
  }
  func.func @transform_3(%arg0: i32, %arg1: i32) -> (i32, i32, i32) {
    %c0_i32 = arith.constant 0 : i32
    %c0_i32_0 = arith.constant 0 : i32
    %c0_i32_1 = arith.constant 0 : i32
    return %arg0, %c0_i32, %c0_i32_0 : i32, i32, i32
  }
  func.func @transform_4(%arg0: i32, %arg1: i32) -> (i32, i32, i32) {
    %c0_i32 = arith.constant 0 : i32
    %c0_i32_0 = arith.constant 0 : i32
    %c0_i32_1 = arith.constant 0 : i32
    return %arg0, %c0_i32, %c0_i32_0 : i32, i32, i32
  }
}

</mosaic_0001>

<llo_original>
// kernel: dice_loss.1
$region0: #{dice_loss.1}
  #allocation0 [shape = 'u32[]', space=smem, size = 0x4, offset = 0x4, fixed_abs, tag = 'smem constant byte address 0x4 - core index']
  #allocation1 [shape = 'u32[144,128]{1,0:T(1,128)}', space=vmem, size = 0x12000, scoped, tag = 'internal scratch']
  %s0 = inlined_call_operand.vmem [shape: f32[2,1024], index: 0, kind: input, shape index: {}]
  %s1 = inlined_call_operand.vmem [shape: f32[2,1024], index: 1, kind: input, shape index: {}]
  %s2 = inlined_call_operand.vmem [shape: f32[1,2,256], index: 2, kind: output, shape index: {0}]
  %s3 = inlined_call_operand.vmem [shape: f32[1,2,256], index: 3, kind: output, shape index: {1}]
  %s4 = inlined_call_operand.vmem [shape: f32[1,2,256], index: 4, kind: output, shape index: {2}]
  %5 = xla_tuple %s2, %s3, %s4
  %s6 = sld [smem:[#allocation0]]
  $region38: #{dice_loss.1} parent=0
    _
  %s8 = ssub.s32 1, %s6
  %s9 = scalar_select 0, %s8, %s6
  // Predicated region
  $region2: #{dice_loss.1} parent=0 // pred_check
    _
  $region3: #{dice_loss.1} parent=0 // pred_check_branch
    %11 = sbr.rel (0) target = $region5
  $region4: #{dice_loss.1} parent=0 // pred_region
    %s12 = sadd.s32 0, 0
    %s13 = smul.u32 2, %s12
    %p14 = scmp.lt.s32.totalorder %s13, 7
    %s15 = scalar_select %p14, %s13, 7
    %s16 = smul.addr %s15, 2
    %s17 = scalar_lea.vmem %s0, %s16
    %s18 = sadd.s32 0, 0
    %s19 = smul.u32 2, %s18
  $region5: #{dice_loss.1} parent=0 // pred_fallthru
    _
  // Predicated region
  $region6: #{dice_loss.1} parent=0 // pred_check
    _
  $region7: #{dice_loss.1} parent=0 // pred_check_branch
    %21 = sbr.rel (0) target = $region9
  $region8: #{dice_loss.1} parent=0 // pred_region
    %s22 = sadd.s32 0, 0
    %s23 = smul.u32 2, %s22
    %p24 = scmp.lt.s32.totalorder %s23, 7
    %s25 = scalar_select %p24, %s23, 7
    %s26 = smul.addr %s25, 2
    %s27 = scalar_lea.vmem %s1, %s26
    %s28 = sadd.s32 0, 0
    %s29 = smul.u32 2, %s28
  $region9: #{dice_loss.1} parent=0 // pred_fallthru
    _
  %s30 = sadd.s32 0, 0
  %s31 = smul.u32 2, %s30
  %p32 = scmp.lt.s32.totalorder %s31, 7
  %s33 = scalar_select %p32, %s31, 7
  %s34 = smul.addr %s33, 2
  %s35 = scalar_lea.vmem %s0, %s34
  %s36 = sadd.s32 0, 0
  %s37 = smul.u32 2, %s36
  %p38 = scmp.lt.s32.totalorder %s37, 7
  %s39 = scalar_select %p38, %s37, 7
  %s40 = smul.addr %s39, 2
  %s41 = scalar_lea.vmem %s1, %s40
  %s42 = sadd.s32 0, 0
  %s43 = smul.u32 2, %s42
  %p44 = scmp.lt.s32.totalorder %s43, 7
  %s45 = scalar_select %p44, %s43, 7
  %s46 = smul.addr %s45, 2
  %s47 = scalar_lea.vmem %s0, %s46
  %s48 = sadd.s32 0, 0
  %s49 = smul.u32 2, %s48
  %s50 = sadd.s32 0, 0
  %s51 = smul.u32 2, %s50
  %p52 = scmp.lt.s32.totalorder %s51, 7
  %s53 = scalar_select %p52, %s51, 7
  %s54 = smul.addr %s53, 2
  %s55 = scalar_lea.vmem %s1, %s54
  %s56 = sadd.s32 0, 0
  %s57 = smul.u32 2, %s56
  %p58 = scmp.eq.s32.totalorder 0, 0
  // Predicated region
  $region10: #{dice_loss.1} parent=0 // pred_check
    %p59 = pneg %p58
  $region11: #{dice_loss.1} parent=0 // pred_check_branch
    %61 = sbr.rel (%p59) target = $region13
  $region12: #{dice_loss.1} parent=0 // pred_region
    %62 = vst [vmem:[%s2] sm:$0xf] 0.0
    %63 = vst [vmem:[%s3] sm:$0xf] 0.0
    %64 = vst [vmem:[%s4] sm:$0xf] 0.0
  $region13: #{dice_loss.1} parent=0 // pred_fallthru
    _
  %v65 = vld [vmem:[%s47] sm:$0xf]
  %v66 = vld [vmem:[%s55] sm:$0xf]
  %v67 = vld [vmem:[%s2] sm:$0xf]
  %v68 = vmul.f32 %v65, %v66
  %v69 = vadd.f32 %v67, %v68
  %70 = vst [vmem:[%s2] sm:$0xf] %v69
  %v71 = vld [vmem:[%s3] sm:$0xf]
  %v72 = vadd.f32 %v71, %v65
  %73 = vst [vmem:[%s3] sm:$0xf] %v72
  %v74 = vld [vmem:[%s4] sm:$0xf]
  %v75 = vadd.f32 %v74, %v66
  %76 = vst [vmem:[%s4] sm:$0xf] %v75
  // Predicated region
  $region14: #{dice_loss.1} parent=0 // pred_check
    _
  $region15: #{dice_loss.1} parent=0 // pred_check_branch
    %78 = sbr.rel (0) target = $region17
  $region16: #{dice_loss.1} parent=0 // pred_region
    _
  $region17: #{dice_loss.1} parent=0 // pred_fallthru
    _
  // Predicated region
  $region18: #{dice_loss.1} parent=0 // pred_check
    _
  $region19: #{dice_loss.1} parent=0 // pred_check_branch
    %80 = sbr.rel (0) target = $region21
  $region20: #{dice_loss.1} parent=0 // pred_region
    _
  $region21: #{dice_loss.1} parent=0 // pred_fallthru
    _
  // Predicated region
  $region22: #{dice_loss.1} parent=0 // pred_check
    _
  $region23: #{dice_loss.1} parent=0 // pred_check_branch
    %82 = sbr.rel (0) target = $region25
  $region24: #{dice_loss.1} parent=0 // pred_region
    _
  $region25: #{dice_loss.1} parent=0 // pred_fallthru
    _
  // Predicated region
  $region26: #{dice_loss.1} parent=0 // pred_check
    _
  $region27: #{dice_loss.1} parent=0 // pred_check_branch
    %84 = sbr.rel (0) target = $region29
  $region28: #{dice_loss.1} parent=0 // pred_region
    _
  $region29: #{dice_loss.1} parent=0 // pred_fallthru
    _
  // Predicated region
  $region30: #{dice_loss.1} parent=0 // pred_check
    _
  $region31: #{dice_loss.1} parent=0 // pred_check_branch
    %86 = sbr.rel (0) target = $region33
  $region32: #{dice_loss.1} parent=0 // pred_region
    _
  $region33: #{dice_loss.1} parent=0 // pred_fallthru
    _
  // Predicated region
  $region34: #{dice_loss.1} parent=0 // pred_check
    _
  $region35: #{dice_loss.1} parent=0 // pred_check_branch
    %88 = sbr.rel (0) target = $region37
  $region36: #{dice_loss.1} parent=0 // pred_region
    _
  $region37: #{dice_loss.1} parent=0 // pred_fallthru
    _

</llo_original>
